<compile_context>
chip_gen: v5e
topology: v5e:2x2
jax: 0.10.0
libtpu: 0.0.40
codegen_flags: <defaults>
</compile_context>

<pallas_src>
import functools
import math

import jax
import jax.numpy as jnp
from jax import lax
from jax.experimental import pallas as pl
from jax.experimental.pallas import tpu as pltpu


# ---------------------------------------------------------------------------
# Kernel body
# ---------------------------------------------------------------------------
def _sdpa_core(q_ref, k_ref, v_ref, bias_ref, out_ref, attn_ref, *,
               scale, approx_recip):
    # q_ref: (tq, D), k_ref: (Lk, D), v_ref: (Lk, Dv),
    # bias_ref: (tqm, Lk) additive bias or None,
    # out_ref: (tq, Dv), attn_ref: (tq, Lk) or None.
    q = q_ref[...] * scale          # native dtype; one cheap VPU mul on the small tile
    k = k_ref[...]
    v = v_ref[...]

    # scores = (q / temperature) @ k^T : contract D of both operands directly
    # (no explicit transpose), f32 MXU accumulator.
    scores = lax.dot_general(
        q, k,
        dimension_numbers=(((1,), (1,)), ((), ())),
        preferred_element_type=jnp.float32,
    )                               # (tq, Lk) f32

    if bias_ref is not None:
        # Additive mask bias (0 where kept, -1e9 where masked); broadcasts over
        # the query rows when the mask is key-padding style.
        scores = scores + bias_ref[...].astype(jnp.float32)

    # numerically stable softmax over keys
    smax = jnp.max(scores, axis=-1, keepdims=True)
    e = jnp.exp(scores - smax)
    denom = jnp.sum(e, axis=-1, keepdims=True)
    if approx_recip:
        attn = e * pl.reciprocal(denom, approx=True)   # EUP slot, frees VALU
    else:
        attn = e / denom                               # exact (matches reference)

    # Cast the (tq, Lk) tile to low precision once; reuse for matmul + writeback.
    attn_lo = attn.astype(v.dtype)
    out = jnp.dot(attn_lo, v, preferred_element_type=jnp.float32)

    out_ref[...] = out.astype(out_ref.dtype)
    if attn_ref is not None:
        if attn_ref.dtype == attn_lo.dtype:
            attn_ref[...] = attn_lo
        else:
            attn_ref[...] = attn.astype(attn_ref.dtype)


def _make_kernel(*, has_mask, with_attn, scale, approx_recip):
    def kernel(*refs):
        q_ref, k_ref, v_ref = refs[0], refs[1], refs[2]
        idx = 3
        bias_ref = None
        if has_mask:
            bias_ref = refs[idx]
            idx += 1
        out_ref = refs[idx]
        idx += 1
        attn_ref = refs[idx] if with_attn else None
        _sdpa_core(q_ref, k_ref, v_ref, bias_ref, out_ref, attn_ref,
                   scale=scale, approx_recip=approx_recip)
    return kernel


# ---------------------------------------------------------------------------
# Wrapper helpers
# ---------------------------------------------------------------------------
def _vmem_capacity_bytes():
    try:
        return int(pltpu.get_tpu_info().vmem_capacity_bytes)
    except Exception:
        return 64 * 1024 * 1024   # conservative default (v7x per-TC VMEM)


def _min_tile_rows(dtype):
    # dtype-aware sublane floor: 8 for 32-bit, 16 for bf16/f16, 32 for 8-bit.
    bits = jnp.dtype(dtype).itemsize * 8
    if bits >= 32:
        return 8
    if bits == 16:
        return 16
    return 32


def _step_bytes(tq, Lk, D, Dv, in_itemsize, out_itemsize, with_attn, mask_block_bytes):
    # Double-buffered DMA blocks + live f32 intermediates (scores, e, attn).
    blocks = (tq * D + Lk * D + Lk * Dv) * in_itemsize + tq * Dv * out_itemsize
    if with_attn:
        blocks += tq * Lk * out_itemsize
    blocks += mask_block_bytes
    temps = 3 * tq * Lk * 4
    return 2 * blocks + temps


def _pick_q_tile(Lq, Lk, D, Dv, in_itemsize, out_itemsize, with_attn,
                 mask_block_per_row_bytes, vmem_budget, min_rows, bh):
    candidates = [t for t in (1024, 512, 256, 128, 64, 32, 16, 8)
                  if t >= min_rows and Lq % t == 0]
    if not candidates:
        candidates = [Lq]   # odd / tiny Lq: whole dim as one block (always allowed)

    def est(t):
        return _step_bytes(t, Lk, D, Dv, in_itemsize, out_itemsize, with_attn,
                           mask_block_per_row_bytes * t)

    tq = candidates[-1]
    for t in candidates:            # largest tile that fits the VMEM budget
        if est(t) <= vmem_budget:
            tq = t
            break

    # Megacore (v7x has 2 TCs): keep enough parallel grid steps when B*H is tiny.
    while (bh * (Lq // tq) < 4 and tq % 2 == 0 and (tq // 2) >= min_rows
           and Lq % (tq // 2) == 0):
        tq //= 2
    return tq


def _mask_to_bias(mask, B, H, Lq, Lk, q_dtype):
    """Convert a broadcastable keep-mask (nonzero = keep) into a compact
    additive bias (0 keep / -1e9 masked), matching masked_fill(mask == 0, -1e9)."""
    m = jnp.asarray(mask)
    if m.ndim > 4:
        raise ValueError(f"mask rank {m.ndim} > 4")
    while m.ndim < 4:
        m = m[None]
    tgt = (B, H, Lq, Lk)
    for s, full in zip(m.shape, tgt):
        if s not in (1, full):
            raise ValueError(f"mask shape {m.shape} not broadcastable to {tgt}")
    if m.shape[-1] != Lk:            # key axis must be materialized at full Lk
        m = jnp.broadcast_to(m, m.shape[:3] + (Lk,))
    # Per-query masks are large: store the bias in bf16 to halve DMA traffic;
    # compact (key-padding) masks stay f32.
    per_query = m.shape[2] == Lq and Lq > 1
    bias_dtype = jnp.bfloat16 if (per_query and jnp.dtype(q_dtype).itemsize < 4) \
        else jnp.float32
    bias = jnp.where(m == 0, -1000000000.0, 0.0).astype(bias_dtype)
    return bias


# ---------------------------------------------------------------------------
# Public entry point
# ---------------------------------------------------------------------------
def scaled_dot_product_attention(q, k, v, temperature, mask=None, *,
                                 return_attn=True, approx_reciprocal=False):
    """Pallas TPU forward of ScaledDotProductAttention.

    q: [B,H,Lq,D], k: [B,H,Lk,D], v: [B,H,Lk,Dv];
    mask: None or broadcastable to [B,H,Lq,Lk] (nonzero = keep).
    Returns (output [B,H,Lq,Dv], attn [B,H,Lq,Lk]) when return_attn=True,
    else just output (halves HBM writeback when attn is discarded)."""
    B, H, Lq, D = q.shape
    Lk = k.shape[2]
    Dv = v.shape[3]

    in_itemsize = jnp.dtype(q.dtype).itemsize
    out_itemsize = in_itemsize
    scale = 1.0 / float(temperature)

    # --- mask -> compact additive bias --------------------------------------
    bias = None
    mask_block_per_row_bytes = 0    # contribution to per-step bytes per query row
    mask_block_fixed_bytes = 0
    if mask is not None:
        bias = _mask_to_bias(mask, B, H, Lq, Lk, q.dtype)
        if bias.shape[2] == Lq and Lq > 1:
            mask_block_per_row_bytes = Lk * jnp.dtype(bias.dtype).itemsize
        else:
            mask_block_fixed_bytes = Lk * jnp.dtype(bias.dtype).itemsize

    # --- VMEM-budget / dtype / megacore aware query tile --------------------
    vmem_cap = _vmem_capacity_bytes()
    vmem_budget = vmem_cap // 2          # leave half for the compiler & pipeline
    min_rows = _min_tile_rows(q.dtype)
    tq = _pick_q_tile(Lq, Lk, D, Dv, in_itemsize, out_itemsize, return_attn,
                      mask_block_per_row_bytes, vmem_budget, min_rows, B * H)
    nq = Lq // tq if Lq % tq == 0 else 1
    if Lq % tq != 0:
        tq = Lq
    grid = (B, H, nq)

    # --- BlockSpecs (squeezed leading dims -> clean 2-D tiles) ---------------
    q_spec = pl.BlockSpec((None, None, tq, D), lambda b, h, i: (b, h, i, 0))
    k_spec = pl.BlockSpec((None, None, Lk, D), lambda b, h, i: (b, h, 0, 0))
    v_spec = pl.BlockSpec((None, None, Lk, Dv), lambda b, h, i: (b, h, 0, 0))
    out_spec = pl.BlockSpec((None, None, tq, Dv), lambda b, h, i: (b, h, i, 0))
    attn_spec = pl.BlockSpec((None, None, tq, Lk), lambda b, h, i: (b, h, i, 0))

    in_specs = [q_spec, k_spec, v_spec]
    operands = [q, k, v]
    if bias is not None:
        Bm, Hm, Lqm, _ = bias.shape
        tqm = tq if Lqm == Lq else 1

        def bias_map(b, h, i, Bm=Bm, Hm=Hm, Lqm=Lqm):
            return (b if Bm > 1 else 0,
                    h if Hm > 1 else 0,
                    i if Lqm > 1 else 0,
                    0)

        in_specs.append(pl.BlockSpec((None, None, tqm, Lk), bias_map))
        operands.append(bias)

    if return_attn:
        out_shape = (jax.ShapeDtypeStruct((B, H, Lq, Dv), q.dtype),
                     jax.ShapeDtypeStruct((B, H, Lq, Lk), q.dtype))
        out_specs = [out_spec, attn_spec]
    else:
        out_shape = jax.ShapeDtypeStruct((B, H, Lq, Dv), q.dtype)
        out_specs = out_spec

    # --- VMEM limit: generation-aware cap, no hard 64 MiB clamp -------------
    est_total = _step_bytes(tq, Lk, D, Dv, in_itemsize, out_itemsize, return_attn,
                            mask_block_per_row_bytes * tq + mask_block_fixed_bytes)
    vmem_cap_limit = max(vmem_cap - (16 << 20), 32 << 20)
    vmem_limit = int(min(max(est_total, 32 << 20), vmem_cap_limit))

    # --- cost estimate (kernel is HBM-write-bound when attn is returned) ----
    flops = 2 * B * H * Lq * Lk * (D + Dv)
    transcendentals = B * H * Lq * Lk
    bytes_accessed = ((q.size + k.size + v.size) * in_itemsize
                      + B * H * Lq * Dv * out_itemsize)
    if return_attn:
        bytes_accessed += B * H * Lq * Lk * out_itemsize
    if bias is not None:
        bytes_accessed += bias.size * jnp.dtype(bias.dtype).itemsize

    kernel = _make_kernel(has_mask=bias is not None, with_attn=return_attn,
                          scale=scale, approx_recip=approx_reciprocal)

    result = pl.pallas_call(
        kernel,
        out_shape=out_shape,
        grid_spec=pltpu.PrefetchScalarGridSpec(
            num_scalar_prefetch=0,
            grid=grid,
            in_specs=in_specs,
            out_specs=out_specs,
        ),
        compiler_params=pltpu.CompilerParams(
            dimension_semantics=("parallel", "parallel", "parallel"),
            vmem_limit_bytes=vmem_limit,
        ),
        cost_estimate=pl.CostEstimate(
            flops=int(flops),
            transcendentals=int(transcendentals),
            bytes_accessed=int(bytes_accessed),
        ),
    )(*operands)

    if return_attn:
        out, attn = result
        return out, attn
    return result


# ---------------------------------------------------------------------------
# Reference + self-test
# ---------------------------------------------------------------------------
def _reference(q, k, v, temperature, mask=None):
    attn = jnp.einsum("bhqd,bhkd->bhqk", q / temperature, k)
    if mask is not None:
        attn = jnp.where(mask == 0, -1000000000.0, attn)
    attn = jax.nn.softmax(attn, axis=-1)
    out = jnp.einsum("bhqk,bhkd->bhqd", attn, v)
    return out, attn


if __name__ == "__main__":
    B, H, Lq, Lk, D = 2, 2, 8, 8, 32
    temperature = math.sqrt(D)

    key = jax.random.PRNGKey(0)
    kq, kk, kv, km = jax.random.split(key, 4)
    q = jax.random.normal(kq, (B, H, Lq, D), dtype=jnp.float32)
    k = jax.random.normal(kk, (B, H, Lk, D), dtype=jnp.float32)
    v = jax.random.normal(kv, (B, H, Lk, D), dtype=jnp.float32)
    # key-padding style mask, broadcast over heads & queries (kept compact)
    mask = (jax.random.uniform(km, (B, 1, 1, Lk)) > 0.2).astype(jnp.int32)

    out0, attn0 = scaled_dot_product_attention(q, k, v, temperature, mask=None)
    out1, attn1 = scaled_dot_product_attention(q, k, v, temperature, mask=mask)
    out2 = scaled_dot_product_attention(q, k, v, temperature, mask=mask,
                                        return_attn=False)
    jax.block_until_ready((out0, attn0, out1, attn1, out2))

    ro0, ra0 = _reference(q, k, v, temperature, mask=None)
    ro1, ra1 = _reference(q, k, v, temperature, mask=mask)

    tol = dict(atol=2e-3, rtol=2e-3)
    assert jnp.allclose(out0, ro0, **tol)
    assert jnp.allclose(attn0, ra0, **tol)
    assert jnp.allclose(out1, ro1, **tol)
    assert jnp.allclose(attn1, ra1, **tol)
    assert jnp.allclose(out2, ro1, **tol)

    print("KERNEL_OK")
</pallas_src>

<mosaic_0001>
module attributes {stable_mosaic.version = 11 : i64} {
  func.func @kernel(%arg0: i32, %arg1: i32, %arg2: i32, %arg3: memref<1x1x8x32xf32, #tpu.memory_space<vmem>>, %arg4: memref<1x1x8x32xf32, #tpu.memory_space<vmem>>, %arg5: memref<1x1x8x32xf32, #tpu.memory_space<vmem>>, %arg6: memref<1x1x8x32xf32, #tpu.memory_space<vmem>>, %arg7: memref<1x1x8x8xf32, #tpu.memory_space<vmem>>) attributes {dimension_semantics = [#tpu.dimension_semantics<parallel>, #tpu.dimension_semantics<parallel>, #tpu.dimension_semantics<parallel>], iteration_bounds = array<i64: 2, 2, 1>, scalar_prefetch = 0 : i64, scratch_operands = 0 : i64, tpu.core_type = #tpu.core_type<tc>, window_params = [{transform_indices = @transform_0, window_bounds = array<i64: 1, 1, 8, 32>}, {transform_indices = @transform_1, window_bounds = array<i64: 1, 1, 8, 32>}, {transform_indices = @transform_2, window_bounds = array<i64: 1, 1, 8, 32>}, {transform_indices = @transform_3, window_bounds = array<i64: 1, 1, 8, 32>}, {transform_indices = @transform_4, window_bounds = array<i64: 1, 1, 8, 8>}]} {
    %c0 = arith.constant 0 : index
    %c0_0 = arith.constant 0 : index
    %c0_1 = arith.constant 0 : index
    %c0_2 = arith.constant 0 : index
    %0 = vector.load %arg3[%c0, %c0_0, %c0_1, %c0_2] : memref<1x1x8x32xf32, #tpu.memory_space<vmem>>, vector<1x1x8x32xf32>
    %1 = vector.shape_cast %0 : vector<1x1x8x32xf32> to vector<8x32xf32>
    %cst = arith.constant 0.176776692 : f32
    %2 = vector.broadcast %cst : f32 to vector<8x32xf32>
    %3 = arith.mulf %1, %2 : vector<8x32xf32>
    %c0_3 = arith.constant 0 : index
    %c0_4 = arith.constant 0 : index
    %c0_5 = arith.constant 0 : index
    %c0_6 = arith.constant 0 : index
    %4 = vector.load %arg4[%c0_3, %c0_4, %c0_5, %c0_6] : memref<1x1x8x32xf32, #tpu.memory_space<vmem>>, vector<1x1x8x32xf32>
    %5 = vector.shape_cast %4 : vector<1x1x8x32xf32> to vector<8x32xf32>
    %c0_7 = arith.constant 0 : index
    %c0_8 = arith.constant 0 : index
    %c0_9 = arith.constant 0 : index
    %c0_10 = arith.constant 0 : index
    %6 = vector.load %arg5[%c0_7, %c0_8, %c0_9, %c0_10] : memref<1x1x8x32xf32, #tpu.memory_space<vmem>>, vector<1x1x8x32xf32>
    %7 = vector.shape_cast %6 : vector<1x1x8x32xf32> to vector<8x32xf32>
    %cst_11 = arith.constant dense<0.000000e+00> : vector<8x8xf32>
    %8 = tpu.matmul %3, %5, %cst_11 {dimension_numbers = #tpu.dot_dimension_numbers<[1], [1], [0], [0], [0, 0, 1, 0], [], []>} : vector<8x32xf32>, vector<8x32xf32>, vector<8x8xf32> -> vector<8x8xf32>
    %cst_12 = arith.constant dense<0xFF800000> : vector<8xf32>
    %9 = vector.multi_reduction <maximumf>, %8, %cst_12 [1] : vector<8x8xf32> to vector<8xf32>
    %10 = vector.shape_cast %9 : vector<8xf32> to vector<8x1xf32>
    %11 = vector.broadcast %10 : vector<8x1xf32> to vector<8x8xf32>
    %12 = arith.subf %8, %11 : vector<8x8xf32>
    %13 = math.exp %12 : vector<8x8xf32>
    %cst_13 = arith.constant dense<0.000000e+00> : vector<8xf32>
    %14 = vector.multi_reduction <add>, %13, %cst_13 [1] : vector<8x8xf32> to vector<8xf32>
    %15 = vector.shape_cast %14 : vector<8xf32> to vector<8x1xf32>
    %16 = vector.broadcast %15 : vector<8x1xf32> to vector<8x8xf32>
    %17 = arith.divf %13, %16 : vector<8x8xf32>
    %cst_14 = arith.constant dense<0.000000e+00> : vector<8x32xf32>
    %18 = tpu.matmul %17, %7, %cst_14 {dimension_numbers = #tpu.dot_dimension_numbers<[1], [0], [0], [1], [0, 0, 1, 1], [], []>} : vector<8x8xf32>, vector<8x32xf32>, vector<8x32xf32> -> vector<8x32xf32>
    %c0_15 = arith.constant 0 : index
    %c0_16 = arith.constant 0 : index
    %c0_17 = arith.constant 0 : index
    %c0_18 = arith.constant 0 : index
    %19 = vector.load %arg6[%c0_15, %c0_16, %c0_17, %c0_18] : memref<1x1x8x32xf32, #tpu.memory_space<vmem>>, vector<1x1x8x32xf32>
    %20 = vector.shape_cast %19 : vector<1x1x8x32xf32> to vector<8x32xf32>
    %21 = vector.shape_cast %18 : vector<8x32xf32> to vector<1x1x8x32xf32>
    tpu.vector_store %arg6[%c0_15, %c0_16, %c0_17, %c0_18], %21 {strides = array<i32>} : memref<1x1x8x32xf32, #tpu.memory_space<vmem>>, vector<1x1x8x32xf32>,
    %c0_19 = arith.constant 0 : index
    %c0_20 = arith.constant 0 : index
    %c0_21 = arith.constant 0 : index
    %c0_22 = arith.constant 0 : index
    %22 = vector.load %arg7[%c0_19, %c0_20, %c0_21, %c0_22] : memref<1x1x8x8xf32, #tpu.memory_space<vmem>>, vector<1x1x8x8xf32>
    %23 = vector.shape_cast %22 : vector<1x1x8x8xf32> to vector<8x8xf32>
    %24 = vector.shape_cast %17 : vector<8x8xf32> to vector<1x1x8x8xf32>
    tpu.vector_store %arg7[%c0_19, %c0_20, %c0_21, %c0_22], %24 {strides = array<i32>} : memref<1x1x8x8xf32, #tpu.memory_space<vmem>>, vector<1x1x8x8xf32>,
    return
  }
  func.func @transform_0(%arg0: i32, %arg1: i32, %arg2: i32) -> (i32, i32, i32, i32) {
    %c0_i32 = arith.constant 0 : i32
    %c0_i32_0 = arith.constant 0 : i32
    return %arg0, %arg1, %arg2, %c0_i32 : i32, i32, i32, i32
  }
  func.func @transform_1(%arg0: i32, %arg1: i32, %arg2: i32) -> (i32, i32, i32, i32) {
    %c0_i32 = arith.constant 0 : i32
    %c0_i32_0 = arith.constant 0 : i32
    %c0_i32_1 = arith.constant 0 : i32
    return %arg0, %arg1, %c0_i32, %c0_i32_0 : i32, i32, i32, i32
  }
  func.func @transform_2(%arg0: i32, %arg1: i32, %arg2: i32) -> (i32, i32, i32, i32) {
    %c0_i32 = arith.constant 0 : i32
    %c0_i32_0 = arith.constant 0 : i32
    %c0_i32_1 = arith.constant 0 : i32
    return %arg0, %arg1, %c0_i32, %c0_i32_0 : i32, i32, i32, i32
  }
  func.func @transform_3(%arg0: i32, %arg1: i32, %arg2: i32) -> (i32, i32, i32, i32) {
    %c0_i32 = arith.constant 0 : i32
    %c0_i32_0 = arith.constant 0 : i32
    return %arg0, %arg1, %arg2, %c0_i32 : i32, i32, i32, i32
  }
  func.func @transform_4(%arg0: i32, %arg1: i32, %arg2: i32) -> (i32, i32, i32, i32) {
    %c0_i32 = arith.constant 0 : i32
    %c0_i32_0 = arith.constant 0 : i32
    return %arg0, %arg1, %arg2, %c0_i32 : i32, i32, i32, i32
  }
}

</mosaic_0001>

<llo_original>
// kernel: tpu_custom_call.1
$region0: #{tpu_custom_call.1}
  #allocation0 [shape = 'u32[]', space=smem, size = 0x4, offset = 0x4, fixed_abs, tag = 'smem constant byte address 0x4 - core index']
  #allocation1 [shape = 'u32[72,128]{1,0:T(1,128)}', space=vmem, size = 0x9000, scoped, tag = 'internal scratch']
  %s0 = inlined_call_operand.hbm [shape: f32[2,2,8,32], index: 0, kind: input, shape index: {}]
  %s1 = inlined_call_operand.hbm [shape: f32[2,2,8,32], index: 1, kind: input, shape index: {}]
  %s2 = inlined_call_operand.hbm [shape: f32[2,2,8,32], index: 2, kind: input, shape index: {}]
  %s3 = inlined_call_operand.hbm [shape: f32[2,2,8,32], index: 3, kind: output, shape index: {0}]
  %s4 = inlined_call_operand.hbm [shape: f32[2,2,8,8], index: 4, kind: output, shape index: {1}]
  %5 = xla_tuple %s3, %s4
  %s6 = sld [smem:[#allocation0]]
  $region65: #{tpu_custom_call.1} parent=0
    _
  %s8 = ssub.s32 1, %s6
  %s9 = scalar_select 0, %s8, %s6
  $region1: #{tpu_custom_call.1} parent=0
    #allocation2 [shape = 'u8[8192]{0}', space=vmem, size = 0x2000, scoped, tag = 'input window, operand 0']
    #allocation3 [shape = 's32[2]{0}', space=sflag, size = 0x8, scoped, tag = 'scoped memory for tpu_custom_call.1']
    #allocation4 [shape = 's32[2]{0}', space=sflag, size = 0x8, scoped, tag = 'scoped memory for tpu_custom_call.1']
    #allocation5 [shape = 'u8[8192]{0}', space=vmem, size = 0x2000, scoped, tag = 'input window, operand 1']
    #allocation6 [shape = 's32[2]{0}', space=sflag, size = 0x8, scoped, tag = 'scoped memory for tpu_custom_call.1']
    #allocation7 [shape = 'u8[8192]{0}', space=vmem, size = 0x2000, scoped, tag = 'input window, operand 2']
    #allocation8 [shape = 'u8[8192]{0}', space=vmem, size = 0x2000, scoped, tag = 'output window, operand 0']
    #allocation9 [shape = 'u8[8192]{0}', space=vmem, size = 0x2000, scoped, tag = 'output window, operand 1']
    #allocation10 [shape = 's32[2]{0}', space=sflag, size = 0x8, scoped, tag = 'scoped memory for tpu_custom_call.1']
    %10 = vsyncpa [#allocation3], 0
    %s11 = scalar_lea.sflag [#allocation3], 1
    %12 = vsyncpa %s11, 0
    %13 = vsyncpa [#allocation6], 0
    %s14 = scalar_lea.sflag [#allocation6], 1
    %15 = vsyncpa %s14, 0
    %16 = vsyncpa [#allocation4], 0
    %s17 = scalar_lea.sflag [#allocation4], 1
    %18 = vsyncpa %s17, 0
    %19 = vsyncpa [#allocation10], 0
    %s20 = scalar_lea.sflag [#allocation10], 1
    %21 = vsyncpa %s20, 0
    loop: start=0, step=1, limit=6
    $region2: #{tpu_custom_call.1} parent=1 // loop_pre_header
      _
    $region3: #{tpu_custom_call.1} parent=1 // loop_header
      %s23 = sphi 0, %s27
      %p24 = scmp.ge.s32.totalorder %s23, 6
      %s30 = sphi 0, %s49
      %s31 = sphi 0, %s45
      %s32 = sphi 0, %s41
      %s33 = sphi 0, %s30
      %s34 = sphi 0, %s31
      %s35 = sphi 0, %s32
      %s36 = sphi 0, %s33
      %s37 = sphi 0, %s34
      %s38 = sphi 0, %s35
      %s56 = sphi 0, %s58
      %s59 = sphi 0, %s56
      %s60 = sphi 0, %s59
      %s76 = sphi 0, %s60
      %s84 = sphi 0, %s86
      %s87 = sphi 0, %s84
      %s88 = sphi 0, %s87
      %s104 = sphi 0, %s88
      %s112 = sphi 0, %s114
      %s115 = sphi 0, %s112
      %s116 = sphi 0, %s115
      %s132 = sphi 0, %s116
      %s142 = sphi 0, %s144
      %s145 = sphi 0, %s142
      %s146 = sphi 0, %s145
      %s162 = sphi 0, %s146
      %s172 = sphi 0, %s174
      %s175 = sphi 0, %s172
      %s176 = sphi 0, %s175
      %s192 = sphi 0, %s176
    $region4: #{tpu_custom_call.1} parent=1 // loop_header_branch
      %26 = sbr.rel (%p24) target = $region8
    $region5: #{tpu_custom_call.1} parent=1 // loop_body
      %s28 = ssub.s32 %s23, 1
      %s29 = ssub.s32 %s23, 2
      %s39 = sadd.s32 1, %s32
      %p40 = scmp.ge.s32.totalorder %s39, 1
      %s41 = scalar_select %p40, 0, %s39
      %s42 = sadd.s32 1, %s31
      %s43 = scalar_select %p40, %s42, %s31
      %p44 = scmp.ge.s32.totalorder %s43, 2
      %s45 = scalar_select %p44, 0, %s43
      %s46 = sadd.s32 1, %s30
      %s47 = scalar_select %p44, %s46, %s30
      %p48 = scmp.ge.s32.totalorder %s47, 2
      %s49 = scalar_select %p48, 0, %s47
      %s50 = ssub.s32 %s30, %s49
      %s51 = ssub.s32 %s31, %s45
      %s52 = sor.u32 %s50, %s51
      %s53 = ssub.s32 %s32, %s41
      %s54 = sor.u32 %s52, %s53
      %p55 = scmp.eq.s32.totalorder %s54, 0
      %s57 = sadd.s32 %s56, 1
      %s58 = scalar_select %p55, %s56, %s57
      %p61 = pneg %p55
      %p62 = scmp.eq.s32.totalorder %s23, 3
      %p63 = por %p61, %p62
      %p64 = scmp.ne.s32.totalorder %s56, %s59
      %p65 = scmp.eq.s32.totalorder %s23, 0
      %p66 = por %p64, %p65
      %p67 = scmp.ne.s32.totalorder %s56, %s59
      %p68 = scmp.eq.s32.totalorder %s28, 3
      %p69 = por %p67, %p68
      %p70 = scmp.ne.s32.totalorder %s59, %s60
      %p71 = scmp.eq.s32.totalorder %s28, 0
      %p72 = por %p70, %p71
      %p73 = scmp.ne.s32.totalorder %s59, %s60
      %p74 = scmp.eq.s32.totalorder %s29, 3
      %p75 = por %p73, %p74
      %p77 = scmp.ne.s32.totalorder %s60, %s76
      %p78 = scmp.eq.s32.totalorder %s29, 0
      %p79 = por %p77, %p78
      %s80 = ssub.s32 %s30, %s49
      %s81 = ssub.s32 %s31, %s45
      %s82 = sor.u32 %s80, %s81
      %p83 = scmp.eq.s32.totalorder %s82, 0
      %s85 = sadd.s32 %s84, 1
      %s86 = scalar_select %p83, %s84, %s85
      %p89 = pneg %p83
      %p90 = scmp.eq.s32.totalorder %s23, 3
      %p91 = por %p89, %p90
      %p92 = scmp.ne.s32.totalorder %s84, %s87
      %p93 = scmp.eq.s32.totalorder %s23, 0
      %p94 = por %p92, %p93
      %p95 = scmp.ne.s32.totalorder %s84, %s87
      %p96 = scmp.eq.s32.totalorder %s28, 3
      %p97 = por %p95, %p96
      %p98 = scmp.ne.s32.totalorder %s87, %s88
      %p99 = scmp.eq.s32.totalorder %s28, 0
      %p100 = por %p98, %p99
      %p101 = scmp.ne.s32.totalorder %s87, %s88
      %p102 = scmp.eq.s32.totalorder %s29, 3
      %p103 = por %p101, %p102
      %p105 = scmp.ne.s32.totalorder %s88, %s104
      %p106 = scmp.eq.s32.totalorder %s29, 0
      %p107 = por %p105, %p106
      %s108 = ssub.s32 %s30, %s49
      %s109 = ssub.s32 %s31, %s45
      %s110 = sor.u32 %s108, %s109
      %p111 = scmp.eq.s32.totalorder %s110, 0
      %s113 = sadd.s32 %s112, 1
      %s114 = scalar_select %p111, %s112, %s113
      %p117 = pneg %p111
      %p118 = scmp.eq.s32.totalorder %s23, 3
      %p119 = por %p117, %p118
      %p120 = scmp.ne.s32.totalorder %s112, %s115
      %p121 = scmp.eq.s32.totalorder %s23, 0
      %p122 = por %p120, %p121
      %p123 = scmp.ne.s32.totalorder %s112, %s115
      %p124 = scmp.eq.s32.totalorder %s28, 3
      %p125 = por %p123, %p124
      %p126 = scmp.ne.s32.totalorder %s115, %s116
      %p127 = scmp.eq.s32.totalorder %s28, 0
      %p128 = por %p126, %p127
      %p129 = scmp.ne.s32.totalorder %s115, %s116
      %p130 = scmp.eq.s32.totalorder %s29, 3
      %p131 = por %p129, %p130
      %p133 = scmp.ne.s32.totalorder %s116, %s132
      %p134 = scmp.eq.s32.totalorder %s29, 0
      %p135 = por %p133, %p134
      %s136 = ssub.s32 %s30, %s49
      %s137 = ssub.s32 %s31, %s45
      %s138 = sor.u32 %s136, %s137
      %s139 = ssub.s32 %s32, %s41
      %s140 = sor.u32 %s138, %s139
      %p141 = scmp.eq.s32.totalorder %s140, 0
      %s143 = sadd.s32 %s142, 1
      %s144 = scalar_select %p141, %s142, %s143
      %p147 = pneg %p141
      %p148 = scmp.eq.s32.totalorder %s23, 3
      %p149 = por %p147, %p148
      %p150 = scmp.ne.s32.totalorder %s142, %s145
      %p151 = scmp.eq.s32.totalorder %s23, 0
      %p152 = por %p150, %p151
      %p153 = scmp.ne.s32.totalorder %s142, %s145
      %p154 = scmp.eq.s32.totalorder %s28, 3
      %p155 = por %p153, %p154
      %p156 = scmp.ne.s32.totalorder %s145, %s146
      %p157 = scmp.eq.s32.totalorder %s28, 0
      %p158 = por %p156, %p157
      %p159 = scmp.ne.s32.totalorder %s145, %s146
      %p160 = scmp.eq.s32.totalorder %s29, 3
      %p161 = por %p159, %p160
      %p163 = scmp.ne.s32.totalorder %s146, %s162
      %p164 = scmp.eq.s32.totalorder %s29, 0
      %p165 = por %p163, %p164
      %s166 = ssub.s32 %s30, %s49
      %s167 = ssub.s32 %s31, %s45
      %s168 = sor.u32 %s166, %s167
      %s169 = ssub.s32 %s32, %s41
      %s170 = sor.u32 %s168, %s169
      %p171 = scmp.eq.s32.totalorder %s170, 0
      %s173 = sadd.s32 %s172, 1
      %s174 = scalar_select %p171, %s172, %s173
      %p177 = pneg %p171
      %p178 = scmp.eq.s32.totalorder %s23, 3
      %p179 = por %p177, %p178
      %p180 = scmp.ne.s32.totalorder %s172, %s175
      %p181 = scmp.eq.s32.totalorder %s23, 0
      %p182 = por %p180, %p181
      %p183 = scmp.ne.s32.totalorder %s172, %s175
      %p184 = scmp.eq.s32.totalorder %s28, 3
      %p185 = por %p183, %p184
      %p186 = scmp.ne.s32.totalorder %s175, %s176
      %p187 = scmp.eq.s32.totalorder %s28, 0
      %p188 = por %p186, %p187
      %p189 = scmp.ne.s32.totalorder %s175, %s176
      %p190 = scmp.eq.s32.totalorder %s29, 3
      %p191 = por %p189, %p190
      %p193 = scmp.ne.s32.totalorder %s176, %s192
      %p194 = scmp.eq.s32.totalorder %s29, 0
      %p195 = por %p193, %p194
      %p196 = scmp.le.s32.totalorder 1, %s23
      %p197 = scmp.lt.s32.totalorder %s23, 5
      %p198 = pnand %p196, %p197
      %p199 = pneg %p198
      // Predicated region
      $region9: #{tpu_custom_call.1} parent=5 // pred_check
        _
      $region10: #{tpu_custom_call.1} parent=5 // pred_check_branch
        %201 = sbr.rel (%p198) target = $region12
      $region11: #{tpu_custom_call.1} parent=5 // pred_region
        %s202 = ssub.s32 %s23, 1
      $region12: #{tpu_custom_call.1} parent=5 // pred_fallthru
        _
      %p203 = scmp.lt.s32.totalorder %s23, 4
      // Predicated region
      $region13: #{tpu_custom_call.1} parent=5 // pred_check
        %p204 = pneg %p203
      $region14: #{tpu_custom_call.1} parent=5 // pred_check_branch
        %206 = sbr.rel (%p204) target = $region16
      $region15: #{tpu_custom_call.1} parent=5 // pred_region
        // Predicated region
        $region17: #{tpu_custom_call.1} parent=15 // pred_check
          %p207 = pneg %p66
        $region18: #{tpu_custom_call.1} parent=15 // pred_check_branch
          %209 = sbr.rel (%p207) target = $region20
        $region19: #{tpu_custom_call.1} parent=15 // pred_region
          %s210 = sand.u32 %s56, 1
          %s211 = scalar_lea.sflag [#allocation3], %s210
          %s212 = sand.u32 %s56, 1
          %s213 = smul.addr %s212, 8
          %s214 = scalar_lea.vmem [#allocation2], %s213
          %216 = vsyncadd %s211, 0
          %s217 = sadd.s32 %s32, %s31
          %s218 = smul.addr %s30, 2
          %s219 = sadd.s32 %s217, %s218
          %s220 = smul.addr %s219, 8
          %s221 = scalar_lea.hbm %s0, %s220
          %s223 = sshll.u32 %s221, 4
          %s224 = int_to_ptr.hbm [resolvable:$true] %s223
          %s225 = sshll.u32 %s214, 4
          %s226 = int_to_ptr.vmem [resolvable:$true] %s225
          %228 = dma.hbm_to_vmem [thread:$0]  %s224, 128, %s226, %s211
        $region20: #{tpu_custom_call.1} parent=15 // pred_fallthru
          _
        // Predicated region
        $region21: #{tpu_custom_call.1} parent=15 // pred_check
          %p229 = pneg %p94
        $region22: #{tpu_custom_call.1} parent=15 // pred_check_branch
          %231 = sbr.rel (%p229) target = $region24
        $region23: #{tpu_custom_call.1} parent=15 // pred_region
          %s232 = sand.u32 %s23, 1
          %s233 = scalar_lea.sflag [#allocation6], %s232
          %s234 = sand.u32 %s84, 1
          %s235 = smul.addr %s234, 8
          %s236 = scalar_lea.vmem [#allocation5], %s235
          %238 = vsyncadd %s233, 0
          %s239 = smul.addr %s30, 2
          %s240 = sadd.s32 %s31, %s239
          %s241 = smul.addr %s240, 8
          %s242 = scalar_lea.hbm %s1, %s241
          %s244 = sshll.u32 %s242, 4
          %s245 = int_to_ptr.hbm [resolvable:$true] %s244
          %s246 = sshll.u32 %s236, 4
          %s247 = int_to_ptr.vmem [resolvable:$true] %s246
          %249 = dma.hbm_to_vmem [thread:$0]  %s245, 128, %s247, %s233
        $region24: #{tpu_custom_call.1} parent=15 // pred_fallthru
          _
        // Predicated region
        $region25: #{tpu_custom_call.1} parent=15 // pred_check
          %p250 = pneg %p122
        $region26: #{tpu_custom_call.1} parent=15 // pred_check_branch
          %252 = sbr.rel (%p250) target = $region28
        $region27: #{tpu_custom_call.1} parent=15 // pred_region
          %s253 = sand.u32 %s23, 1
          %s254 = scalar_lea.sflag [#allocation6], %s253
          %s255 = sand.u32 %s112, 1
          %s256 = smul.addr %s255, 8
          %s257 = scalar_lea.vmem [#allocation7], %s256
          %259 = vsyncadd %s254, 0
          %s260 = smul.addr %s30, 2
          %s261 = sadd.s32 %s31, %s260
          %s262 = smul.addr %s261, 8
          %s263 = scalar_lea.hbm %s2, %s262
          %s265 = sshll.u32 %s263, 4
          %s266 = int_to_ptr.hbm [resolvable:$true] %s265
          %s267 = sshll.u32 %s257, 4
          %s268 = int_to_ptr.vmem [resolvable:$true] %s267
          %270 = dma.hbm_to_vmem [thread:$0]  %s266, 128, %s268, %s254
        $region28: #{tpu_custom_call.1} parent=15 // pred_fallthru
          _
      $region16: #{tpu_custom_call.1} parent=5 // pred_fallthru
        _
      %p271 = scmp.le.s32.totalorder 1, %s23
      %p272 = scmp.lt.s32.totalorder %s23, 5
      %p273 = pnand %p271, %p272
      %p274 = pneg %p273
      // Predicated region
      $region29: #{tpu_custom_call.1} parent=5 // pred_check
        _
      $region30: #{tpu_custom_call.1} parent=5 // pred_check_branch
        %276 = sbr.rel (%p273) target = $region32
      $region31: #{tpu_custom_call.1} parent=5 // pred_region
        %s277 = ssub.s32 %s23, 1
        %s278 = sand.u32 %s59, 1
        %s279 = scalar_lea.sflag [#allocation3], %s278
        %s280 = sand.u32 %s59, 1
        %s281 = smul.addr %s280, 8
        %s282 = scalar_lea.vmem [#allocation2], %s281
        // Predicated region
        $region33: #{tpu_custom_call.1} parent=31 // pred_check
          %p283 = pneg %p72
        $region34: #{tpu_custom_call.1} parent=31 // pred_check_branch
          %285 = sbr.rel (%p283) target = $region36
        $region35: #{tpu_custom_call.1} parent=31 // pred_region
          %287 = dma.done %s279, 128
        $region36: #{tpu_custom_call.1} parent=31 // pred_fallthru
          _
        %s288 = sand.u32 %s28, 1
        %s289 = scalar_lea.sflag [#allocation6], %s288
        %s290 = sand.u32 %s87, 1
        %s291 = smul.addr %s290, 8
        %s292 = scalar_lea.vmem [#allocation5], %s291
        // Predicated region
        $region37: #{tpu_custom_call.1} parent=31 // pred_check
          %p293 = pneg %p100
        $region38: #{tpu_custom_call.1} parent=31 // pred_check_branch
          %295 = sbr.rel (%p293) target = $region40
        $region39: #{tpu_custom_call.1} parent=31 // pred_region
          %297 = dma.done %s289, 128
        $region40: #{tpu_custom_call.1} parent=31 // pred_fallthru
          _
        %s298 = sand.u32 %s28, 1
        %s299 = scalar_lea.sflag [#allocation6], %s298
        %s300 = sand.u32 %s115, 1
        %s301 = smul.addr %s300, 8
        %s302 = scalar_lea.vmem [#allocation7], %s301
        // Predicated region
        $region41: #{tpu_custom_call.1} parent=31 // pred_check
          %p303 = pneg %p128
        $region42: #{tpu_custom_call.1} parent=31 // pred_check_branch
          %305 = sbr.rel (%p303) target = $region44
        $region43: #{tpu_custom_call.1} parent=31 // pred_region
          %307 = dma.done %s299, 128
        $region44: #{tpu_custom_call.1} parent=31 // pred_fallthru
          _
        %s308 = sand.u32 %s59, 1
        %s309 = scalar_lea.sflag [#allocation3], %s308
        %s310 = sand.u32 %s59, 1
        %s311 = smul.addr %s310, 8
        %s312 = scalar_lea.vmem [#allocation2], %s311
        %p313 = pneg %p72
        %p314 = pneg %p69
        %s315 = sand.u32 %s28, 1
        %s316 = scalar_lea.sflag [#allocation6], %s315
        %s317 = sand.u32 %s87, 1
        %s318 = smul.addr %s317, 8
        %s319 = scalar_lea.vmem [#allocation5], %s318
        %p320 = pneg %p100
        %p321 = pneg %p97
        %s322 = sand.u32 %s28, 1
        %s323 = scalar_lea.sflag [#allocation6], %s322
        %s324 = sand.u32 %s115, 1
        %s325 = smul.addr %s324, 8
        %s326 = scalar_lea.vmem [#allocation7], %s325
        %p327 = pneg %p128
        %p328 = pneg %p125
        %p329 = pneg %p158
        %p330 = pneg %p155
        %s331 = sand.u32 %s145, 1
        %s332 = scalar_lea.sflag [#allocation4], %s331
        %s333 = sand.u32 %s145, 1
        %s334 = smul.addr %s333, 8
        %s335 = scalar_lea.vmem [#allocation8], %s334
        %p336 = pneg %p188
        %p337 = pneg %p185
        %s338 = sand.u32 %s175, 1
        %s339 = scalar_lea.sflag [#allocation10], %s338
        %s340 = sand.u32 %s175, 1
        %s341 = smul.addr %s340, 8
        %s342 = scalar_lea.vmem [#allocation9], %s341
        %v343 = vld [vmem:[%s282] sm:$0xff]
        %v344 = vmul.f32 %v343, 0.17677669
        %v345 = vld [vmem:[%s292] sm:$0xff]
        %v346 = vld [vmem:[%s302] sm:$0xff]
        %vm347 = vcmask 261120
        %v349 = vsel %vm347, %v344, 0
        %v352 = vsel %vm347, %v345, 0
        %354 = vmatpush.xpose.msra.mxu0 0.0
        %355 = vmatpush.xpose.msra.mxu0 0.0
        %356 = vmatpush.xpose.msra.mxu0 0.0
        %357 = vmatpush.xpose.msra.mxu0 0.0
        %358 = vmatpush.xpose.msra.mxu0 0.0
        %359 = vmatpush.xpose.msra.mxu0 0.0
        %360 = vmatpush.xpose.msra.mxu0 0.0
        %361 = vmatpush.xpose.msra.mxu0 0.0
        %362 = vmatpush.xpose.msra.mxu0 0.0
        %363 = vmatpush.xpose.msra.mxu0 0.0
        %364 = vmatpush.xpose.msra.mxu0 0.0
        %365 = vmatpush.xpose.msra.mxu0 0.0
        %366 = vmatpush.xpose.msra.mxu0 0.0
        %367 = vmatpush.xpose.msra.mxu0 0.0
        %368 = vmatpush.xpose.msra.mxu0 0.0
        %369 = vmatpush.xpose.msra.mxu0 %v352
        %370 = vmatmul.f32.gmra.mxu0 %v349
        %v371 = vpop.f32.mrf.mxu0
        %v372 = vadd.f32 0.0, %v371
        %373 = vdwg.mxu0
        %vm374 = vcmask 64512
        %v375 = vsel %vm374, %v372, -inf
        %376 = vmax.xlane.f32.xlu0 %v375
        %v377 = vpop.xlane.xlu0 %376
        %v378 = vsub.f32 %v372, %v377
        %v379 = vmul.f32 %v378, 1.442695
        %v380 = vpow.pop %v379
        %v381 = vsel %vm374, %v380, 0.0
        %382 = vadd.xlane.f32.xlu0 %v381
        %v383 = vpop.xlane.xlu0 %382
        %v384 = vrcp.pop %v383
        %v385 = vmul.f32 %v383, %v384
        %v386 = vsub.f32 1.0, %v385
        %v387 = vmul.f32 %v384, %v386
        %v388 = vadd.f32 %v384, %v387
        %vm389 = vweird.f32 %v383
        %vm390 = vweird.f32 %v384
        %vm391 = vmor %vm389, %vm390
        %v392 = vsel %vm391, %v384, %v388
        %v393 = vand.u32 2147483647, %v383
        %vm394 = vcmp.eq.f32.partialorder %v393, 8.507059e+37
        %v395 = vand.u32 %v383, 2147483648
        %v396 = vor.u32 1.1754944e-38, %v395
        %v397 = vsel %vm394, %v396, %v392
        %v398 = vmul.f32 %v380, %v397
        %v400 = vsel %vm374, %v398, 0
        %402 = vmatpush.msra.mxu0 0.0
        %403 = vmatpush.msra.mxu0 0.0
        %404 = vmatpush.msra.mxu0 0.0
        %405 = vmatpush.msra.mxu0 0.0
        %406 = vmatpush.msra.mxu0 0.0
        %407 = vmatpush.msra.mxu0 0.0
        %408 = vmatpush.msra.mxu0 0.0
        %409 = vmatpush.msra.mxu0 0.0
        %410 = vmatpush.msra.mxu0 0.0
        %411 = vmatpush.msra.mxu0 0.0
        %412 = vmatpush.msra.mxu0 0.0
        %413 = vmatpush.msra.mxu0 0.0
        %414 = vmatpush.msra.mxu0 0.0
        %415 = vmatpush.msra.mxu0 0.0
        %416 = vmatpush.msra.mxu0 0.0
        %417 = vmatpush.msra.mxu0 %v346
        %418 = vmatmul.f32.gmra.mxu0 %v400
        %v419 = vpop.f32.mrf.mxu0
        %v420 = vadd.f32 0.0, %v419
        %421 = vdwg.mxu0
        %422 = vst.msk [vmem:[%s335] sm:$0xff] %vm347, %v420
        %423 = vst.msk [vmem:[%s342] sm:$0xff] %vm374, %v398
        %s424 = sand.u32 %s145, 1
        %s425 = scalar_lea.sflag [#allocation4], %s424
        %s426 = sand.u32 %s145, 1
        %s427 = smul.addr %s426, 8
        %s428 = scalar_lea.vmem [#allocation8], %s427
        %s429 = sand.u32 %s175, 1
        %s430 = scalar_lea.sflag [#allocation10], %s429
        %s431 = sand.u32 %s175, 1
        %s432 = smul.addr %s431, 8
        %s433 = scalar_lea.vmem [#allocation9], %s432
        // Predicated region
        $region45: #{tpu_custom_call.1} parent=31 // pred_check
          %p434 = pneg %p155
        $region46: #{tpu_custom_call.1} parent=31 // pred_check_branch
          %436 = sbr.rel (%p434) target = $region48
        $region47: #{tpu_custom_call.1} parent=31 // pred_region
          %438 = vsyncadd %s425, 0
          %s439 = sadd.s32 %s35, %s34
          %s440 = smul.addr %s33, 2
          %s441 = sadd.s32 %s439, %s440
          %s442 = smul.addr %s441, 8
          %s443 = scalar_lea.hbm %s3, %s442
          %s445 = sshll.u32 %s428, 4
          %s446 = int_to_ptr.vmem [resolvable:$true] %s445
          %s447 = sshll.u32 %s443, 4
          %s448 = int_to_ptr.hbm [resolvable:$true] %s447
          %450 = dma.vmem_to_hbm [thread:$0]  %s446, 128, %s448, %s425
        $region48: #{tpu_custom_call.1} parent=31 // pred_fallthru
          _
        // Predicated region
        $region49: #{tpu_custom_call.1} parent=31 // pred_check
          %p451 = pneg %p185
        $region50: #{tpu_custom_call.1} parent=31 // pred_check_branch
          %453 = sbr.rel (%p451) target = $region52
        $region51: #{tpu_custom_call.1} parent=31 // pred_region
          %455 = vsyncadd %s430, 0
          %s456 = sadd.s32 %s35, %s34
          %s457 = smul.addr %s33, 2
          %s458 = sadd.s32 %s456, %s457
          %s459 = smul.addr %s458, 8
          %s460 = scalar_lea.hbm %s4, %s459
          %s462 = sshll.u32 %s433, 4
          %s463 = int_to_ptr.vmem [resolvable:$true] %s462
          %s464 = sshll.u32 %s460, 4
          %s465 = int_to_ptr.hbm [resolvable:$true] %s464
          %467 = dma.vmem_to_hbm [thread:$0]  %s463, 128, %s465, %s430
        $region52: #{tpu_custom_call.1} parent=31 // pred_fallthru
          _
      $region32: #{tpu_custom_call.1} parent=5 // pred_fallthru
        _
      %p468 = scmp.le.s32.totalorder 2, %s23
      // Predicated region
      $region53: #{tpu_custom_call.1} parent=5 // pred_check
        %p469 = pneg %p468
      $region54: #{tpu_custom_call.1} parent=5 // pred_check_branch
        %471 = sbr.rel (%p469) target = $region56
      $region55: #{tpu_custom_call.1} parent=5 // pred_region
        %s472 = ssub.s32 %s23, 2
        // Predicated region
        $region57: #{tpu_custom_call.1} parent=55 // pred_check
          %p473 = pneg %p161
        $region58: #{tpu_custom_call.1} parent=55 // pred_check_branch
          %475 = sbr.rel (%p473) target = $region60
        $region59: #{tpu_custom_call.1} parent=55 // pred_region
          %s476 = sand.u32 %s146, 1
          %s477 = scalar_lea.sflag [#allocation4], %s476
          %s478 = sand.u32 %s146, 1
          %s479 = smul.addr %s478, 8
          %s480 = scalar_lea.vmem [#allocation8], %s479
          %482 = dma.done %s477, 128
        $region60: #{tpu_custom_call.1} parent=55 // pred_fallthru
          _
        // Predicated region
        $region61: #{tpu_custom_call.1} parent=55 // pred_check
          %p483 = pneg %p191
        $region62: #{tpu_custom_call.1} parent=55 // pred_check_branch
          %485 = sbr.rel (%p483) target = $region64
        $region63: #{tpu_custom_call.1} parent=55 // pred_region
          %s486 = sand.u32 %s176, 1
          %s487 = scalar_lea.sflag [#allocation10], %s486
          %s488 = sand.u32 %s176, 1
          %s489 = smul.addr %s488, 8
          %s490 = scalar_lea.vmem [#allocation9], %s489
          %492 = dma.done %s487, 128
        $region64: #{tpu_custom_call.1} parent=55 // pred_fallthru
          _
      $region56: #{tpu_custom_call.1} parent=5 // pred_fallthru
        _
    $region6: #{tpu_custom_call.1} parent=1 // loop_footer
      %s27 = sadd.s32 1, %s23
    $region7: #{tpu_custom_call.1} parent=1 // loop_footer_branch
      %22 = sbr.rel target = $region3
    $region8: #{tpu_custom_call.1} parent=1 // loop_exit
      _
    %493 = vsyncpa [#allocation3], 1
    %s494 = scalar_lea.sflag [#allocation3], 1
    %495 = vsyncpa %s494, 1
    %496 = vsyncpa [#allocation6], 1
    %s497 = scalar_lea.sflag [#allocation6], 1
    %498 = vsyncpa %s497, 1
    %499 = vsyncpa [#allocation4], 1
    %s500 = scalar_lea.sflag [#allocation4], 1
    %501 = vsyncpa %s500, 1
    %502 = vsyncpa [#allocation10], 1
    %s503 = scalar_lea.sflag [#allocation10], 1
    %504 = vsyncpa %s503, 1

</llo_original>
